<compile_context>
chip_gen: v6e
topology: v6e:2x2x1
jax: 0.10.0
libtpu: 0.0.40
codegen_flags: <defaults>
</compile_context>

<pallas_src>
import jax
import jax.numpy as jnp
from jax import lax
from jax.experimental import pallas as pl
from jax.experimental.pallas import tpu as pltpu

NUM_CLASS_A = 5      # len(['Abstract','Background','Methods','Results','Conclusion'])
NUM_NER_LABELS = 11  # tner/bionlp2004 BIO tag set size (max tag id + 1)
LANE = 128
_PAD_BIAS = -1e9     # padded logit lanes -> very negative (argmax-safe)

# TODO(synk): tokenizer / pretrained RoBERTa backbone / dataset label alignment
# are external components and are not reproducible inside a Pallas kernel.


# ----------------------------------------------------------------------------
# Helpers
# ----------------------------------------------------------------------------
def _pick_tile(total, pref, align):
    """Largest tile <= pref that divides `total` and is a multiple of `align`,
    falling back to the full extent (always correct for any shape)."""
    if total <= pref or total <= align:
        return total
    t = (min(pref, total) // align) * align
    while t >= align:
        if total % t == 0:
            return t
        t -= align
    return total


def _prep_head(w, b, mm_dtype):
    """Zero-pad (H, C) weight to a lane-dense 128-multiple in the matmul dtype
    and pad the f32 bias with a large negative value in the extra lanes so the
    padded logits are argmax-safe."""
    h, c = w.shape
    cp = max(LANE, ((c + LANE - 1) // LANE) * LANE)
    wp = jnp.zeros((h, cp), mm_dtype).at[:, :c].set(w.astype(mm_dtype))
    bp = jnp.full((1, cp), _PAD_BIAS, jnp.float32).at[:, :c].set(
        b.reshape(1, c).astype(jnp.float32))
    return wp, bp, cp


def _prefix_mask(len_ref, tb, ts, s_idx):
    """(tb, ts, 1) f32 prefix mask rebuilt in-kernel from per-row lengths."""
    pos = (lax.broadcasted_iota(jnp.int32, (tb, ts, 1), 1)
           + s_idx * ts).astype(jnp.float32)
    return (pos < len_ref[...][:, :, None]).astype(jnp.float32)


# ----------------------------------------------------------------------------
# Kernels
# ----------------------------------------------------------------------------
def _task_a_kernel(h_ref, len_ref, w_ref, b_ref, o_ref, sum_acc):
    """Masked mean pooling over the sequence + sentence classifier.
    Grid: (batch tiles, sequence tiles); the sequence axis is a reduction
    carried in f32 VMEM scratch across grid steps."""
    s_idx = pl.program_id(1)
    tb, ts, _ = h_ref.shape

    @pl.when(s_idx == 0)
    def _init():
        sum_acc[...] = jnp.zeros_like(sum_acc)

    m = _prefix_mask(len_ref, tb, ts, s_idx)                  # (tb, ts, 1)
    sum_acc[...] += jnp.sum(h_ref[...].astype(jnp.float32) * m, axis=1)

    @pl.when(s_idx == pl.num_programs(1) - 1)
    def _finalize():
        # sum_mask == sequence length; clamp(min=1e-9) as in the reference.
        inv = 1.0 / jnp.maximum(len_ref[...], 1e-9)           # (tb, 1)
        pooled = sum_acc[...] * inv                           # (tb, H) f32
        # dropout(p=0.1) -> identity (inference)
        logits = jnp.dot(pooled.astype(w_ref.dtype), w_ref[...],
                         preferred_element_type=jnp.float32)  # (tb, cp)
        o_ref[...] = (logits + b_ref[...]).astype(o_ref.dtype)


def _task_b_kernel(h_ref, w_ref, b_ref, o_ref):
    """Per-token NER head on a row tile: (TR, H) @ (H, 128) + b."""
    # dropout(p=0.1) -> identity (inference)
    logits = jnp.dot(h_ref[...].astype(w_ref.dtype), w_ref[...],
                     preferred_element_type=jnp.float32)
    o_ref[...] = (logits + b_ref[...]).astype(o_ref.dtype)


def _fused_kernel(h_ref, len_ref, wa_ref, ba_ref, wb_ref, bb_ref,
                  ner_ref, cls_ref, sum_acc):
    """Both heads from a single read of each (TB, TS, H) activation tile."""
    s_idx = pl.program_id(1)
    tb, ts, hdim = h_ref.shape
    lp = ner_ref.shape[-1]

    h = h_ref[...]

    # ---- Task B: one MXU matmul for the whole tile (shares the h DMA). ----
    ner = jnp.dot(h.reshape(tb * ts, hdim).astype(wb_ref.dtype), wb_ref[...],
                  preferred_element_type=jnp.float32)         # (tb*ts, lp)
    ner_ref[...] = (ner + bb_ref[...]).reshape(tb, ts, lp).astype(ner_ref.dtype)

    # ---- Task A: masked running f32 sums over the sequence axis. ----
    @pl.when(s_idx == 0)
    def _init():
        sum_acc[...] = jnp.zeros_like(sum_acc)

    m = _prefix_mask(len_ref, tb, ts, s_idx)                  # (tb, ts, 1)
    sum_acc[...] += jnp.sum(h.astype(jnp.float32) * m, axis=1)

    @pl.when(s_idx == pl.num_programs(1) - 1)
    def _finalize():
        inv = 1.0 / jnp.maximum(len_ref[...], 1e-9)
        pooled = sum_acc[...] * inv
        logits = jnp.dot(pooled.astype(wa_ref.dtype), wa_ref[...],
                         preferred_element_type=jnp.float32)
        cls_ref[...] = (logits + ba_ref[...]).astype(cls_ref.dtype)


# ----------------------------------------------------------------------------
# Parameters / wrappers
# ----------------------------------------------------------------------------
def init_params(hidden_size, num_class_a=NUM_CLASS_A,
                num_ner_labels=NUM_NER_LABELS, seed=0):
    k = jax.random.PRNGKey(seed)
    k1, k2, k3, k4 = jax.random.split(k, 4)
    scale = 1.0 / jnp.sqrt(jnp.float32(hidden_size))
    return {
        "classifier_w": jax.random.normal(k1, (hidden_size, num_class_a), jnp.float32) * scale,
        "classifier_b": jax.random.normal(k2, (1, num_class_a), jnp.float32) * 0.01,
        "ner_w": jax.random.normal(k3, (hidden_size, num_ner_labels), jnp.float32) * scale,
        "ner_b": jax.random.normal(k4, (1, num_ner_labels), jnp.float32) * 0.01,
    }


def _itemsize(x):
    return jnp.dtype(x.dtype).itemsize


def multi_task_forward(hidden_states, attention_mask, params, task="A",
                       matmul_dtype=jnp.bfloat16, return_padded=False):
    """hidden_states: (B, S, H) ~ roberta last_hidden_state (f32 or bf16).
       attention_mask: (B, S) {0,1}; assumed to be a contiguous prefix mask
       (as produced by tokenizer padding) — only its per-row sum is used.
       return_padded=True skips the narrowing slice and returns lane-dense
       (…, 128) logits whose padded lanes are ~-1e9 (argmax-safe)."""
    B, S, H = hidden_states.shape

    if task == "A":
        wp, bp, cp = _prep_head(params["classifier_w"], params["classifier_b"], matmul_dtype)
        ca = params["classifier_w"].shape[1]
        lengths = jnp.sum(attention_mask.astype(jnp.float32), axis=1).reshape(B, 1)
        tb = _pick_tile(B, 8, 8)
        ts = _pick_tile(S, 256, 8)
        grid = (B // tb, S // ts)
        cost = pl.CostEstimate(
            flops=int(3 * B * S * H + 2 * B * H * cp),
            transcendentals=0,
            bytes_accessed=int(hidden_states.size * _itemsize(hidden_states)
                               + wp.size * _itemsize(wp) + B * cp * 4))
        out = pl.pallas_call(
            _task_a_kernel,
            out_shape=jax.ShapeDtypeStruct((B, cp), jnp.float32),
            grid=grid,
            in_specs=[
                pl.BlockSpec((tb, ts, H), lambda b, s: (b, s, 0)),
                pl.BlockSpec((tb, 1), lambda b, s: (b, 0)),
                pl.BlockSpec((H, cp), lambda b, s: (0, 0)),
                pl.BlockSpec((1, cp), lambda b, s: (0, 0)),
            ],
            out_specs=pl.BlockSpec((tb, cp), lambda b, s: (b, 0)),
            scratch_shapes=[pltpu.VMEM((tb, H), jnp.float32)],
            compiler_params=pltpu.CompilerParams(
                dimension_semantics=("parallel", "arbitrary")),
            cost_estimate=cost,
        )(hidden_states, lengths, wp, bp)
        return out if return_padded else out[:, :ca]

    elif task == "B":
        wp, bp, lp = _prep_head(params["ner_w"], params["ner_b"], matmul_dtype)
        nl = params["ner_w"].shape[1]
        rows = B * S
        h_flat = hidden_states.reshape(rows, H)
        # Cap the row tile at rows//2 so the parallel axis has >= 2 blocks
        # (keeps both v7x TensorCores busy); conservative enough for VMEM.
        tr = _pick_tile(rows, min(2048, max(8, rows // 2)), 8)
        grid = (rows // tr,)
        cost = pl.CostEstimate(
            flops=int(2 * rows * H * lp),
            transcendentals=0,
            bytes_accessed=int(rows * H * _itemsize(hidden_states)
                               + wp.size * _itemsize(wp) + rows * lp * 4))
        out = pl.pallas_call(
            _task_b_kernel,
            out_shape=jax.ShapeDtypeStruct((rows, lp), jnp.float32),
            grid=grid,
            in_specs=[
                pl.BlockSpec((tr, H), lambda r: (r, 0)),
                pl.BlockSpec((H, lp), lambda r: (0, 0)),
                pl.BlockSpec((1, lp), lambda r: (0, 0)),
            ],
            out_specs=pl.BlockSpec((tr, lp), lambda r: (r, 0)),
            compiler_params=pltpu.CompilerParams(
                dimension_semantics=("parallel",)),
            cost_estimate=cost,
        )(h_flat, wp, bp)
        out = out.reshape(B, S, lp)
        return out if return_padded else out[..., :nl]

    else:
        raise ValueError("Task must be either 'A' (Classification) or 'B' (NER).")


def multi_task_forward_fused(hidden_states, attention_mask, params,
                             matmul_dtype=jnp.bfloat16, return_padded=False):
    """Both heads with a single HBM read of hidden_states (preferred when both
    heads are needed).  Returns (task A logits (B, Ca), task B logits (B, S, L));
    with return_padded=True the lane-dense padded logits are returned and no
    extra slice pass over the outputs is issued."""
    B, S, H = hidden_states.shape
    wa, ba, cp = _prep_head(params["classifier_w"], params["classifier_b"], matmul_dtype)
    wb, bb, lp = _prep_head(params["ner_w"], params["ner_b"], matmul_dtype)
    ca = params["classifier_w"].shape[1]
    nl = params["ner_w"].shape[1]
    lengths = jnp.sum(attention_mask.astype(jnp.float32), axis=1).reshape(B, 1)
    tb = _pick_tile(B, 8, 8)
    ts = _pick_tile(S, 256, 8)
    grid = (B // tb, S // ts)
    cost = pl.CostEstimate(
        flops=int(2 * B * S * H * lp + 2 * B * H * cp + 3 * B * S * H),
        transcendentals=0,
        bytes_accessed=int(hidden_states.size * _itemsize(hidden_states)
                           + (wa.size + wb.size) * _itemsize(wa)
                           + B * S * lp * 4 + B * cp * 4))
    ner, cls = pl.pallas_call(
        _fused_kernel,
        out_shape=(jax.ShapeDtypeStruct((B, S, lp), jnp.float32),
                   jax.ShapeDtypeStruct((B, cp), jnp.float32)),
        grid=grid,
        in_specs=[
            pl.BlockSpec((tb, ts, H), lambda b, s: (b, s, 0)),
            pl.BlockSpec((tb, 1), lambda b, s: (b, 0)),
            pl.BlockSpec((H, cp), lambda b, s: (0, 0)),
            pl.BlockSpec((1, cp), lambda b, s: (0, 0)),
            pl.BlockSpec((H, lp), lambda b, s: (0, 0)),
            pl.BlockSpec((1, lp), lambda b, s: (0, 0)),
        ],
        out_specs=(
            pl.BlockSpec((tb, ts, lp), lambda b, s: (b, s, 0)),
            pl.BlockSpec((tb, cp), lambda b, s: (b, 0)),
        ),
        scratch_shapes=[pltpu.VMEM((tb, H), jnp.float32)],
        compiler_params=pltpu.CompilerParams(
            dimension_semantics=("parallel", "arbitrary")),
        cost_estimate=cost,
    )(hidden_states, lengths, wa, ba, wb, bb)
    if return_padded:
        return cls, ner
    return cls[:, :ca], ner[..., :nl]


# ----------------------------------------------------------------------------
# Reference + test
# ----------------------------------------------------------------------------
def _reference(hidden_states, attention_mask, params, task):
    h = hidden_states.astype(jnp.float32)
    m = attention_mask.astype(jnp.float32)[..., None]
    if task == "A":
        pooled = jnp.sum(h * m, axis=1) / jnp.maximum(jnp.sum(m, axis=1), 1e-9)
        return pooled @ params["classifier_w"] + params["classifier_b"]
    return jnp.einsum("bsh,hl->bsl", h, params["ner_w"]) + params["ner_b"]


if __name__ == "__main__":
    def _check(B, S, H, seed):
        key = jax.random.PRNGKey(seed)
        kh, km = jax.random.split(key)
        # Synthetic stand-in for roberta(...).last_hidden_state
        hidden = jax.random.normal(kh, (B, S, H), jnp.float32)
        lens = jax.random.randint(km, (B,), 1, S + 1)
        attention_mask = (jnp.arange(S)[None, :] < lens[:, None]).astype(jnp.int32)
        params = init_params(H, seed=seed)

        ref_a = _reference(hidden, attention_mask, params, "A")
        ref_b = _reference(hidden, attention_mask, params, "B")

        # Exact path: f32 matmul operands, tight tolerance.
        a32 = multi_task_forward(hidden, attention_mask, params, task="A",
                                 matmul_dtype=jnp.float32)
        b32 = multi_task_forward(hidden, attention_mask, params, task="B",
                                 matmul_dtype=jnp.float32)
        fa32, fb32 = multi_task_forward_fused(hidden, attention_mask, params,
                                              matmul_dtype=jnp.float32)
        jax.block_until_ready((a32, b32, fa32, fb32))
        assert a32.shape == (B, NUM_CLASS_A)
        assert b32.shape == (B, S, NUM_NER_LABELS)
        for got, want in ((a32, ref_a), (b32, ref_b), (fa32, ref_a), (fb32, ref_b)):
            err = float(jnp.max(jnp.abs(got - want)))
            assert jnp.allclose(got, want, atol=2e-5, rtol=2e-5), err

        # Fast path: bf16 matmul operands (default), relaxed tolerance.
        fa16, fb16 = multi_task_forward_fused(hidden, attention_mask, params)
        jax.block_until_ready((fa16, fb16))
        for got, want in ((fa16, ref_a), (fb16, ref_b)):
            err = float(jnp.max(jnp.abs(got - want)))
            assert jnp.allclose(got, want, atol=8e-2, rtol=8e-2), err

        # bf16 activations end-to-end (halves the dominant HBM read).
        hidden16 = hidden.astype(jnp.bfloat16)
        ref_a16 = _reference(hidden16, attention_mask, params, "A")
        ref_b16 = _reference(hidden16, attention_mask, params, "B")
        ga, gb = multi_task_forward_fused(hidden16, attention_mask, params)
        jax.block_until_ready((ga, gb))
        for got, want in ((ga, ref_a16), (gb, ref_b16)):
            err = float(jnp.max(jnp.abs(got - want)))
            assert jnp.allclose(got, want, atol=8e-2, rtol=8e-2), err

    # Small shapes consistent with the module's forward (B, S, H) — grid (1, 1).
    _check(B=2, S=8, H=32, seed=0)
    # Larger (still small) shape exercising the tiled / accumulator path:
    # Task A / fused grid = (1, 2), Task B grid = (2,).
    _check(B=8, S=512, H=64, seed=1)

    print("KERNEL_OK")
</pallas_src>

<mosaic_0001>
module attributes {stable_mosaic.version = 11 : i64} {
  func.func @_task_a_kernel(%arg0: i32, %arg1: i32, %arg2: memref<2x8x32xf32, #tpu.memory_space<vmem>>, %arg3: memref<2x1xf32, #tpu.memory_space<vmem>>, %arg4: memref<32x128xf32, #tpu.memory_space<vmem>>, %arg5: memref<1x128xf32, #tpu.memory_space<vmem>>, %arg6: memref<2x128xf32, #tpu.memory_space<vmem>>, %arg7: memref<2x32xf32, #tpu.memory_space<vmem>>) attributes {dimension_semantics = [#tpu.dimension_semantics<parallel>, #tpu.dimension_semantics<arbitrary>], iteration_bounds = array<i64: 1, 1>, scalar_prefetch = 0 : i64, scratch_operands = 1 : i64, tpu.core_type = #tpu.core_type<tc>, window_params = [{transform_indices = @transform_0, window_bounds = array<i64: 2, 8, 32>}, {transform_indices = @transform_1, window_bounds = array<i64: 2, 1>}, {pipeline_mode = #tpu.pipeline_mode<synchronous>, transform_indices = @transform_2, window_bounds = array<i64: 32, 128>}, {pipeline_mode = #tpu.pipeline_mode<synchronous>, transform_indices = @transform_3, window_bounds = array<i64: 1, 128>}, {transform_indices = @transform_4, window_bounds = array<i64: 2, 128>}]} {
    %c0_i32 = arith.constant 0 : i32
    %0 = arith.cmpi eq, %arg1, %c0_i32 : i32
    %1 = arith.extui %0 : i1 to i32
    %c0_i32_0 = arith.constant 0 : i32
    %2 = arith.cmpi ne, %1, %c0_i32_0 : i32
    scf.if %2 {
      %cst_11 = arith.constant 0.000000e+00 : f32
      %24 = vector.broadcast %cst_11 : f32 to vector<2x32xf32>
      %c0_12 = arith.constant 0 : index
      %c0_13 = arith.constant 0 : index
      %25 = vector.load %arg7[%c0_12, %c0_13] : memref<2x32xf32, #tpu.memory_space<vmem>>, vector<2x32xf32>
      tpu.vector_store %arg7[%c0_12, %c0_13], %24 {strides = array<i32>} : memref<2x32xf32, #tpu.memory_space<vmem>>, vector<2x32xf32>,
    } else {
    }
    %3 = tpu.iota {dimensions = array<i32: 1>} : vector<2x8x1xi32>
    %c8_i32 = arith.constant 8 : i32
    %4 = arith.muli %arg1, %c8_i32 : i32
    %5 = vector.broadcast %4 : i32 to vector<2x8x1xi32>
    %6 = arith.addi %3, %5 : vector<2x8x1xi32>
    %7 = arith.sitofp %6 : vector<2x8x1xi32> to vector<2x8x1xf32>
    %c0 = arith.constant 0 : index
    %c0_1 = arith.constant 0 : index
    %8 = vector.load %arg3[%c0, %c0_1] : memref<2x1xf32, #tpu.memory_space<vmem>>, vector<2x1xf32>
    %9 = vector.shape_cast %8 : vector<2x1xf32> to vector<2x1x1xf32>
    %10 = vector.broadcast %9 : vector<2x1x1xf32> to vector<2x8x1xf32>
    %11 = arith.cmpf olt, %7, %10 : vector<2x8x1xf32>
    %12 = arith.extui %11 : vector<2x8x1xi1> to vector<2x8x1xi32>
    %13 = arith.sitofp %12 : vector<2x8x1xi32> to vector<2x8x1xf32>
    %c0_2 = arith.constant 0 : index
    %c0_3 = arith.constant 0 : index
    %14 = vector.load %arg7[%c0_2, %c0_3] : memref<2x32xf32, #tpu.memory_space<vmem>>, vector<2x32xf32>
    %c0_4 = arith.constant 0 : index
    %c0_5 = arith.constant 0 : index
    %c0_6 = arith.constant 0 : index
    %15 = vector.load %arg2[%c0_4, %c0_5, %c0_6] : memref<2x8x32xf32, #tpu.memory_space<vmem>>, vector<2x8x32xf32>
    %16 = vector.broadcast %13 : vector<2x8x1xf32> to vector<2x8x32xf32>
    %17 = arith.mulf %15, %16 : vector<2x8x32xf32>
    %cst = arith.constant dense<0.000000e+00> : vector<2x32xf32>
    %18 = vector.multi_reduction <add>, %17, %cst [1] : vector<2x8x32xf32> to vector<2x32xf32>
    %19 = arith.addf %14, %18 : vector<2x32xf32>
    %c0_7 = arith.constant 0 : index
    %c0_8 = arith.constant 0 : index
    %20 = vector.load %arg7[%c0_7, %c0_8] : memref<2x32xf32, #tpu.memory_space<vmem>>, vector<2x32xf32>
    tpu.vector_store %arg7[%c0_7, %c0_8], %19 {strides = array<i32>} : memref<2x32xf32, #tpu.memory_space<vmem>>, vector<2x32xf32>,
    %c0_i32_9 = arith.constant 0 : i32
    %21 = arith.cmpi eq, %arg1, %c0_i32_9 : i32
    %22 = arith.extui %21 : i1 to i32
    %c0_i32_10 = arith.constant 0 : i32
    %23 = arith.cmpi ne, %22, %c0_i32_10 : i32
    scf.if %23 {
      %c0_11 = arith.constant 0 : index
      %c0_12 = arith.constant 0 : index
      %24 = vector.load %arg3[%c0_11, %c0_12] : memref<2x1xf32, #tpu.memory_space<vmem>>, vector<2x1xf32>
      %cst_13 = arith.constant 9.99999971E-10 : f32
      %25 = vector.broadcast %cst_13 : f32 to vector<2x1xf32>
      %26 = arith.maximumf %24, %25 : vector<2x1xf32>
      %cst_14 = arith.constant 1.000000e+00 : f32
      %27 = vector.broadcast %cst_14 : f32 to vector<2x1xf32>
      %28 = arith.divf %27, %26 : vector<2x1xf32>
      %c0_15 = arith.constant 0 : index
      %c0_16 = arith.constant 0 : index
      %29 = vector.load %arg7[%c0_15, %c0_16] : memref<2x32xf32, #tpu.memory_space<vmem>>, vector<2x32xf32>
      %30 = vector.broadcast %28 : vector<2x1xf32> to vector<2x32xf32>
      %31 = arith.mulf %29, %30 : vector<2x32xf32>
      %c0_17 = arith.constant 0 : index
      %c0_18 = arith.constant 0 : index
      %32 = vector.load %arg4[%c0_17, %c0_18] : memref<32x128xf32, #tpu.memory_space<vmem>>, vector<32x128xf32>
      %cst_19 = arith.constant dense<0.000000e+00> : vector<2x128xf32>
      %33 = tpu.matmul %31, %32, %cst_19 {dimension_numbers = #tpu.dot_dimension_numbers<[1], [0], [0], [1], [0, 0, 1, 1], [], []>} : vector<2x32xf32>, vector<32x128xf32>, vector<2x128xf32> -> vector<2x128xf32>
      %c0_20 = arith.constant 0 : index
      %c0_21 = arith.constant 0 : index
      %34 = vector.load %arg5[%c0_20, %c0_21] : memref<1x128xf32, #tpu.memory_space<vmem>>, vector<1x128xf32>
      %35 = vector.broadcast %34 : vector<1x128xf32> to vector<2x128xf32>
      %36 = arith.addf %33, %35 : vector<2x128xf32>
      %c0_22 = arith.constant 0 : index
      %c0_23 = arith.constant 0 : index
      %37 = vector.load %arg6[%c0_22, %c0_23] : memref<2x128xf32, #tpu.memory_space<vmem>>, vector<2x128xf32>
      tpu.vector_store %arg6[%c0_22, %c0_23], %36 {strides = array<i32>} : memref<2x128xf32, #tpu.memory_space<vmem>>, vector<2x128xf32>,
    } else {
    }
    return
  }
  func.func @transform_0(%arg0: i32, %arg1: i32) -> (i32, i32, i32) {
    %c0_i32 = arith.constant 0 : i32
    %c0_i32_0 = arith.constant 0 : i32
    return %arg0, %arg1, %c0_i32 : i32, i32, i32
  }
  func.func @transform_1(%arg0: i32, %arg1: i32) -> (i32, i32) {
    %c0_i32 = arith.constant 0 : i32
    %c0_i32_0 = arith.constant 0 : i32
    return %arg0, %c0_i32 : i32, i32
  }
  func.func @transform_2(%arg0: i32, %arg1: i32) -> (i32, i32) {
    %c0_i32 = arith.constant 0 : i32
    %c0_i32_0 = arith.constant 0 : i32
    %c0_i32_1 = arith.constant 0 : i32
    return %c0_i32, %c0_i32_0 : i32, i32
  }
  func.func @transform_3(%arg0: i32, %arg1: i32) -> (i32, i32) {
    %c0_i32 = arith.constant 0 : i32
    %c0_i32_0 = arith.constant 0 : i32
    %c0_i32_1 = arith.constant 0 : i32
    return %c0_i32, %c0_i32_0 : i32, i32
  }
  func.func @transform_4(%arg0: i32, %arg1: i32) -> (i32, i32) {
    %c0_i32 = arith.constant 0 : i32
    %c0_i32_0 = arith.constant 0 : i32
    return %arg0, %c0_i32 : i32, i32
  }
}

</mosaic_0001>

<llo_original>
// kernel: tpu_custom_call.1
$region0: #{tpu_custom_call.1}
  #allocation0 [shape = 'u32[]', space=smem, size = 0x4, offset = 0x4, fixed_abs, tag = 'smem constant byte address 0x4 - core index']
  #allocation1 [shape = 'u32[144,128]{1,0:T(1,128)}', space=vmem, size = 0x12000, scoped, tag = 'internal scratch']
  #allocation2 [shape = 'f32[2,32]{1,0:T(2,128)}', space=vmem, size = 0x400, scoped, tag = 'scratch operand']
  %s0 = inlined_call_operand.hbm [shape: f32[2,8,32], index: 0, kind: input, shape index: {}]
  %s1 = inlined_call_operand.vmem [shape: f32[2,1], index: 1, kind: input, shape index: {}]
  %s2 = inlined_call_operand.hbm [shape: f32[32,128], index: 2, kind: input, shape index: {}]
  %s3 = inlined_call_operand.vmem [shape: f32[1,128], index: 3, kind: input, shape index: {}]
  %s4 = inlined_call_operand.hbm [shape: f32[2,128], index: 4, kind: output, shape index: {}]
  %s5 = sld [smem:[#allocation0]]
  $region42: #{tpu_custom_call.1} parent=0
    _
  %s7 = ssub.s32 1, %s5
  %s8 = scalar_select 0, %s7, %s5
  $region1: #{tpu_custom_call.1} parent=0
    #allocation3 [shape = 'u8[8192]{0}', space=vmem, size = 0x2000, scoped, tag = 'input window, operand 0, single buffered']
    #allocation4 [shape = 's32[1]{0}', space=sflag, size = 0x4, scoped, tag = 'scoped memory for tpu_custom_call.1']
    #allocation5 [shape = 's32[1]{0}', space=sflag, size = 0x4, scoped, tag = 'scoped memory for tpu_custom_call.1']
    #allocation6 [shape = 'u8[16384]{0}', space=vmem, size = 0x4000, scoped, tag = 'input window, operand 2, single buffered']
    #allocation7 [shape = 's32[1]{0}', space=sflag, size = 0x4, scoped, tag = 'scoped memory for tpu_custom_call.1']
    #allocation8 [shape = 'u8[1024]{0}', space=vmem, size = 0x400, scoped, tag = 'output window, operand 0, single buffered']
    %9 = vsyncpa [#allocation4], 0
    %10 = vsyncpa [#allocation7], 0
    %11 = vsyncpa [#allocation5], 0
    // Predicated region
    $region2: #{tpu_custom_call.1} parent=1 // pred_check
      _
    $region3: #{tpu_custom_call.1} parent=1 // pred_check_branch
      %13 = sbr.rel (0) target = $region5
    $region4: #{tpu_custom_call.1} parent=1 // pred_region
      %s15 = ssub.s32 256, 256
      %16 = vsyncadd [#allocation4], %s15
      %s17 = sshll.u32 [#allocation3], 4
      %s18 = int_to_ptr.vmem [resolvable:$true] %s17
      %23 = dma.hbm_to_vmem [thread:$0]  %s0, 256, %s18, [#allocation4], 128, 128, 8
    $region5: #{tpu_custom_call.1} parent=1 // pred_fallthru
      _
    // Predicated region
    $region6: #{tpu_custom_call.1} parent=1 // pred_check
      _
    $region7: #{tpu_custom_call.1} parent=1 // pred_check_branch
      %25 = sbr.rel (0) target = $region9
    $region8: #{tpu_custom_call.1} parent=1 // pred_region
      _
    $region9: #{tpu_custom_call.1} parent=1 // pred_fallthru
      _
    // Predicated region
    $region10: #{tpu_custom_call.1} parent=1 // pred_check
      _
    $region11: #{tpu_custom_call.1} parent=1 // pred_check_branch
      %27 = sbr.rel (0) target = $region13
    $region12: #{tpu_custom_call.1} parent=1 // pred_region
      %s29 = ssub.s32 512, 512
      %30 = vsyncadd [#allocation7], %s29
      %s31 = sshll.u32 [#allocation6], 4
      %s32 = int_to_ptr.vmem [resolvable:$true] %s31
      %37 = dma.hbm_to_vmem [thread:$0]  %s2, 512, %s32, [#allocation7], 128, 128, 8
    $region13: #{tpu_custom_call.1} parent=1 // pred_fallthru
      _
    // Predicated region
    $region14: #{tpu_custom_call.1} parent=1 // pred_check
      _
    $region15: #{tpu_custom_call.1} parent=1 // pred_check_branch
      %39 = sbr.rel (0) target = $region17
    $region16: #{tpu_custom_call.1} parent=1 // pred_region
      _
    $region17: #{tpu_custom_call.1} parent=1 // pred_fallthru
      _
    // Predicated region
    $region18: #{tpu_custom_call.1} parent=1 // pred_check
      _
    $region19: #{tpu_custom_call.1} parent=1 // pred_check_branch
      %41 = sbr.rel (0) target = $region21
    $region20: #{tpu_custom_call.1} parent=1 // pred_region
      %42 = dma.done [#allocation4], 256
    $region21: #{tpu_custom_call.1} parent=1 // pred_fallthru
      _
    // Predicated region
    $region22: #{tpu_custom_call.1} parent=1 // pred_check
      _
    $region23: #{tpu_custom_call.1} parent=1 // pred_check_branch
      %44 = sbr.rel (0) target = $region25
    $region24: #{tpu_custom_call.1} parent=1 // pred_region
      %45 = dma.done [#allocation7], 512
    $region25: #{tpu_custom_call.1} parent=1 // pred_fallthru
      _
    %p46 = scmp.eq.s32.totalorder 0, 0
    // Predicated region
    $region26: #{tpu_custom_call.1} parent=1 // pred_check
      %p47 = pneg %p46
    $region27: #{tpu_custom_call.1} parent=1 // pred_check_branch
      %49 = sbr.rel (%p47) target = $region29
    $region28: #{tpu_custom_call.1} parent=1 // pred_region
      %vm50 = vcmask 254976
      %51 = vst.msk [vmem:[#allocation2] sm:$0x3] %vm50, 0.0
    $region29: #{tpu_custom_call.1} parent=1 // pred_fallthru
      _
    %v52 = vlaneseq
    %v53 = vshrl.u32 %v52, 7
    %s54 = smul.u32 0, 8
    %v55 = vstv %s54
    %v56 = vadd.s32 %v53, %v55
    %v57 = vcvt.s32.f32 %v56
    %v58 = vld [vmem:[%s1] sm:$0x3]
    %v61 = vunpack.c.l.s4 1966171168
    %v62 = vunpack.c.0.s8 %v61
    %v63 = vlaneseq
    %v64 = vshrl.u32 %v63, 7
    %v65 = vsub.s32 %v62, %v64
    %v66 = vrot.slane %v58, %v65
    %v67 = vcombine.high %v66, %v66
    %v69 = vunpack.c.l.s4 1966171168
    %v70 = vunpack.c.0.s8 %v69
    %v71 = vlaneseq
    %v72 = vshrl.u32 %v71, 7
    %v73 = vsub.s32 %v70, %v72
    %v74 = vrot.slane %v66, %v73
    %v76 = vunpack.c.l.s4 1966171168
    %v77 = vunpack.c.0.s8 %v76
    %v78 = vlaneseq
    %v79 = vshrl.u32 %v78, 7
    %v80 = vsub.s32 %v77, %v79
    %v81 = vrot.slane %v67, %v80
    %v82 = vlaneseq
    %v83 = vshrl.u32 %v82, 7
    %v84 = vsub.s32 0, %v83
    %v85 = vrot.slane %v74, %v84
    %v86 = vlaneseq
    %v87 = vshrl.u32 %v86, 7
    %v88 = vsub.s32 0, %v87
    %v89 = vrot.slane %v81, %v88
    %vm92 = vcmp.lt.f32.partialorder %v57, %v85
    %vm93 = vcmp.lt.f32.partialorder %v57, %v89
    %v94 = vsel %vm92, 1, 0
    %v95 = vsel %vm93, 1, 0
    %v96 = vcvt.s32.f32 %v94
    %v97 = vcvt.s32.f32 %v95
    %v98 = vld [vmem:[#allocation2] sm:$0x3]
    %v99 = vld [vmem:[#allocation3] sm:$0xff]
    %v100 = vld [vmem:[#allocation3 + $0x8] sm:$0xff]
    %102 = vset.pattern.permute.xlu0 0
    %103 = vperm.xlu0 %102, %v96
    %v104 = vpop.permute.xlu0 %103
    %107 = vset.pattern.permute.xlu0 0
    %108 = vperm.xlu0 %107, %v97
    %v109 = vpop.permute.xlu0 %108
    %v111 = vmul.f32 %v99, %v104
    %v112 = vmul.f32 %v100, %v109
    %vm113 = vcmask 261120
    %v114 = vsel %vm113, %v111, 0.0
    %v115 = vrot.slane %v114, 4
    %v116 = vadd.f32 %v114, %v115
    %v117 = vrot.slane %v116, 2
    %v118 = vadd.f32 %v116, %v117
    %v119 = vrot.slane %v118, 1
    %v120 = vadd.f32 %v118, %v119
    %v121 = vsel %vm113, %v112, 0.0
    %v122 = vrot.slane %v121, 4
    %v123 = vadd.f32 %v121, %v122
    %v124 = vrot.slane %v123, 2
    %v125 = vadd.f32 %v123, %v124
    %v126 = vrot.slane %v125, 1
    %v127 = vadd.f32 %v125, %v126
    %vm130 = vcmask 1041409
    %v131 = vsel %vm130, %v127, %v120
    %v133 = vadd.f32 %v98, %v131
    %vm134 = vcmask 254976
    %135 = vst.msk [vmem:[#allocation2] sm:$0x3] %vm134, %v133
    // Predicated region
    $region30: #{tpu_custom_call.1} parent=1 // pred_check
      %p136 = pneg %p46
    $region31: #{tpu_custom_call.1} parent=1 // pred_check_branch
      %138 = sbr.rel (%p136) target = $region33
    $region32: #{tpu_custom_call.1} parent=1 // pred_region
      %v139 = vld [vmem:[%s1] sm:$0x3]
      %v140 = vmax.f32 %v139, 1e-09
      %v141 = vrcp.pop %v140
      %v142 = vmul.f32 1.0, %v141
      %v143 = vld [vmem:[#allocation2] sm:$0x3]
      %145 = vset.pattern.permute.xlu0 0
      %146 = vperm.xlu0 %145, %v142
      %v147 = vpop.permute.xlu0 %146
      %v149 = vmul.f32 %v143, %v147
      %v150 = vld [vmem:[#allocation6] sm:$0xff]
      %v151 = vld [vmem:[#allocation6 + $0x8] sm:$0xff]
      %v152 = vld [vmem:[#allocation6 + $0x10] sm:$0xff]
      %v153 = vld [vmem:[#allocation6 + $0x18] sm:$0xff]
      %v154 = vld [vmem:[%s3] sm:$0x1]
      %v156 = vlaneseq
      %v157 = vshrl.u32 %v156, 7
      %v158 = vsub.s32 0, %v157
      %v159 = vrot.slane %v154, %v158
      %v162 = vsel %vm113, %v149, 0
      %164 = vmatprep.subr.mxu0 0.0
      %165 = vmatpush1.msra.mxu0 0.0
      %166 = vmatprep.subr.mxu0 0.0
      %167 = vmatpush1.msra.mxu0 0.0
      %168 = vmatprep.subr.mxu0 0.0
      %169 = vmatpush1.msra.mxu0 0.0
      %170 = vmatprep.subr.mxu0 0.0
      %171 = vmatpush1.msra.mxu0 0.0
      %172 = vmatprep.subr.mxu0 0.0
      %173 = vmatpush1.msra.mxu0 0.0
      %174 = vmatprep.subr.mxu0 0.0
      %175 = vmatpush1.msra.mxu0 0.0
      %176 = vmatprep.subr.mxu0 0.0
      %177 = vmatpush1.msra.mxu0 0.0
      %178 = vmatprep.subr.mxu0 0.0
      %179 = vmatpush1.msra.mxu0 0.0
      %180 = vmatprep.subr.mxu0 0.0
      %181 = vmatpush1.msra.mxu0 0.0
      %182 = vmatprep.subr.mxu0 0.0
      %183 = vmatpush1.msra.mxu0 0.0
      %184 = vmatprep.subr.mxu0 0.0
      %185 = vmatpush1.msra.mxu0 0.0
      %186 = vmatprep.subr.mxu0 0.0
      %187 = vmatpush1.msra.mxu0 0.0
      %188 = vmatprep.subr.mxu0 0.0
      %189 = vmatpush1.msra.mxu0 %v153
      %190 = vmatprep.subr.mxu0 0.0
      %191 = vmatpush1.msra.mxu0 %v152
      %192 = vmatprep.subr.mxu0 0.0
      %193 = vmatpush1.msra.mxu0 %v151
      %194 = vmatprep.subr.mxu0 0.0
      %195 = vmatpush1.msra.mxu0 %v150
      %196 = vmatprep.subr.mxu0 0.0
      %197 = vmatpush2.msra.mxu0 0.0
      %198 = vmatprep.subr.mxu0 0.0
      %199 = vmatpush2.msra.mxu0 0.0
      %200 = vmatprep.subr.mxu0 0.0
      %201 = vmatpush2.msra.mxu0 0.0
      %202 = vmatprep.subr.mxu0 0.0
      %203 = vmatpush2.msra.mxu0 0.0
      %204 = vmatprep.subr.mxu0 0.0
      %205 = vmatpush2.msra.mxu0 0.0
      %206 = vmatprep.subr.mxu0 0.0
      %207 = vmatpush2.msra.mxu0 0.0
      %208 = vmatprep.subr.mxu0 0.0
      %209 = vmatpush2.msra.mxu0 0.0
      %210 = vmatprep.subr.mxu0 0.0
      %211 = vmatpush2.msra.mxu0 0.0
      %212 = vmatprep.subr.mxu0 0.0
      %213 = vmatpush2.msra.mxu0 0.0
      %214 = vmatprep.subr.mxu0 0.0
      %215 = vmatpush2.msra.mxu0 0.0
      %216 = vmatprep.subr.mxu0 0.0
      %217 = vmatpush2.msra.mxu0 0.0
      %218 = vmatprep.subr.mxu0 0.0
      %219 = vmatpush2.msra.mxu0 0.0
      %220 = vmatprep.subr.mxu0 0.0
      %221 = vmatpush2.msra.mxu0 0.0
      %222 = vmatprep.subr.mxu0 0.0
      %223 = vmatpush2.msra.mxu0 0.0
      %224 = vmatprep.subr.mxu0 0.0
      %225 = vmatpush2.msra.mxu0 0.0
      %226 = vmatprep.subr.mxu0 0.0
      %227 = vmatpush2.msra.mxu0 0.0
      %228 = vmatprep.mubr.f32.mxu0 0.0
      %229 = vmatmul.mubr.f32.gmra.mxu0 %v162
      %v230 = vpop.f32.mrf.mxu0
      %v231 = vadd.f32 %v159, %v230
      %v232 = vpop.f32.mrf.mxu0
      %233 = vdwg.mxu0
      %234 = vst [vmem:[#allocation8] sm:$0x3] %v231
    $region33: #{tpu_custom_call.1} parent=1 // pred_fallthru
      _
    // Predicated region
    $region34: #{tpu_custom_call.1} parent=1 // pred_check
      _
    $region35: #{tpu_custom_call.1} parent=1 // pred_check_branch
      %236 = sbr.rel (0) target = $region37
    $region36: #{tpu_custom_call.1} parent=1 // pred_region
      %s238 = ssub.s32 32, 32
      %239 = vsyncadd [#allocation5], %s238
      %s241 = sshll.u32 [#allocation8], 4
      %s242 = int_to_ptr.vmem [resolvable:$true] %s241
      %244 = dma.vmem_to_hbm [thread:$0]  %s242, 32, %s4, [#allocation5]
    $region37: #{tpu_custom_call.1} parent=1 // pred_fallthru
      _
    // Predicated region
    $region38: #{tpu_custom_call.1} parent=1 // pred_check
      _
    $region39: #{tpu_custom_call.1} parent=1 // pred_check_branch
      %246 = sbr.rel (0) target = $region41
    $region40: #{tpu_custom_call.1} parent=1 // pred_region
      %247 = dma.done [#allocation5], 32
    $region41: #{tpu_custom_call.1} parent=1 // pred_fallthru
      _
    %248 = vsyncpa [#allocation4], 1
    %249 = vsyncpa [#allocation7], 1
    %250 = vsyncpa [#allocation5], 1

</llo_original>
